<compile_context>
chip_gen: v5e
topology: v5e:2x2
jax: 0.10.0
libtpu: 0.0.40
codegen_flags: <defaults>
</compile_context>

<pallas_src>
import functools
import numpy as np
import jax
import jax.numpy as jnp
from jax.experimental import pallas as pl
from jax.experimental.pallas import tpu as pltpu


def make_pos_table(max_len: int, feature_dim: int) -> jnp.ndarray:
    """Deterministic sinusoidal table, identical math to the PyTorch __init__."""
    pos = np.arange(max_len, dtype=np.float64)[:, None]
    i = np.arange(feature_dim, dtype=np.float64)[None, :]
    angle = pos / np.power(10000.0, 2.0 * i / feature_dim)
    table = angle.copy()
    table[0, :] = 0.0                        # pos == 0 row is all zeros
    table[1:, 0::2] = np.sin(angle[1:, 0::2])
    table[1:, 1::2] = np.cos(angle[1:, 1::2])
    return jnp.asarray(table, dtype=jnp.float32)


def _hash_u32(x):
    """splitmix32-style finalizer: uint32 -> well-mixed uint32 (VPU-only ops)."""
    x = x ^ (x >> jnp.uint32(16))
    x = x * jnp.uint32(0x7FEB352D)
    x = x ^ (x >> jnp.uint32(15))
    x = x * jnp.uint32(0x846CA68B)
    x = x ^ (x >> jnp.uint32(16))
    return x


def _pe_dropout_kernel(seed_ref, x_ref, pos_ref, o_ref, *,
                       p_drop: float, tB: int, tL: int):
    """y = x + pos (broadcast over batch rows), then train-mode dropout."""
    y = x_ref[...] + pos_ref[...]            # (tB, tL) + (1, tL) sublane broadcast

    if p_drop > 0.0:
        i = pl.program_id(0)                  # batch-row tile
        j = pl.program_id(1)                  # flattened (seq*feat) tile
        # Unique per-element counter across the whole array (2D iota only).
        row = jax.lax.broadcasted_iota(jnp.int32, y.shape, 0) + i * tB
        col = jax.lax.broadcasted_iota(jnp.int32, y.shape, 1) + j * tL
        ctr = (row.astype(jnp.uint32) * jnp.uint32(0x9E3779B1)) \
              ^ col.astype(jnp.uint32) \
              ^ seed_ref[0].astype(jnp.uint32)
        bits = _hash_u32(ctr)
        # Integer-space threshold compare: no int->float convert, no 1/2^24 mul.
        r24 = (bits >> jnp.uint32(8)).astype(jnp.int32)       # in [0, 2^24)
        thresh = jnp.int32(int(round(p_drop * float(1 << 24))))
        keep = r24 >= thresh                                   # P(keep) = 1 - p
        scale = jnp.float32(1.0 / (1.0 - p_drop))
        y = jnp.where(keep, y * scale, jnp.float32(0.0))

    o_ref[...] = y.astype(o_ref.dtype)


def _choose_block(B: int, L: int):
    """Pick (tB, tL) that is lane-dense and <= ~2 MiB/buffer (safe on v5e/v7x)."""
    tB = B if B < 8 else 8
    if L % 128 != 0:
        tL = L                      # full-extent last dim is always legal
    else:
        tL = min(L, 64 * 1024)      # multiple of 128; 8*64K*4B = 2 MiB per block
    return tB, tL


def positional_encoding(enc_inputs: jnp.ndarray,
                        pos_table: jnp.ndarray,
                        *,
                        seed: int = 0,
                        p_drop: float = 0.1) -> jnp.ndarray:
    """Pallas equivalent of PositionalEncoding.forward (training-mode dropout).

    enc_inputs: (B, S, D) float32
    pos_table : (max_len, D) float32 ; only the first S rows are used.
    """
    B, S, D = enc_inputs.shape
    L = S * D
    # Lane-dense views: each batch row becomes one contiguous length-L row; the
    # positional table flattens the same way, so the broadcast-add is row-wise.
    x_flat = enc_inputs.reshape(B, L)
    pos_flat = pos_table[:S, :].reshape(1, L)
    seed_arr = jnp.asarray([seed], dtype=jnp.int32)

    tB, tL = _choose_block(B, L)
    grid = (pl.cdiv(B, tB), pl.cdiv(L, tL))

    kernel = functools.partial(_pe_dropout_kernel,
                               p_drop=float(p_drop), tB=tB, tL=tL)

    out_flat = pl.pallas_call(
        kernel,
        out_shape=jax.ShapeDtypeStruct((B, L), enc_inputs.dtype),
        grid_spec=pltpu.PrefetchScalarGridSpec(
            num_scalar_prefetch=1,
            grid=grid,
            in_specs=[
                pl.BlockSpec((tB, tL), lambda i, j, s: (i, j)),   # x
                pl.BlockSpec((1, tL),  lambda i, j, s: (0, j)),   # pos table
            ],
            out_specs=pl.BlockSpec((tB, tL), lambda i, j, s: (i, j)),
        ),
        compiler_params=pltpu.CompilerParams(
            # No cross-iteration state (dropout mask is counter-based), so both
            # grid axes are parallel -> Mosaic can split them across v7x's 2 TCs.
            dimension_semantics=("parallel", "parallel"),
        ),
    )(seed_arr, x_flat, pos_flat)

    return out_flat.reshape(B, S, D)


if __name__ == "__main__":
    B, S, D = 2, 8, 32
    MAX_LEN = 64
    P_DROP = 0.1

    key = jax.random.PRNGKey(0)
    x = jax.random.normal(key, (B, S, D), dtype=jnp.float32)
    table = make_pos_table(MAX_LEN, D)

    # 1) Deterministic path (dropout off): must equal x + pos exactly.
    out_nodrop = positional_encoding(x, table, seed=0, p_drop=0.0)
    jax.block_until_ready(out_nodrop)
    ref = np.asarray(x) + np.asarray(table[:S])[None, :, :]
    assert out_nodrop.shape == x.shape and out_nodrop.dtype == x.dtype
    assert np.allclose(np.asarray(out_nodrop), ref, rtol=1e-6, atol=1e-6)

    # 2) Training-mode dropout: surviving elements equal (x + pos) / (1 - p),
    #    dropped elements are exactly zero, and some (but not all) are dropped.
    out = positional_encoding(x, table, seed=0, p_drop=P_DROP)
    jax.block_until_ready(out)
    out_np = np.asarray(out)
    ref_scaled = ref / (1.0 - P_DROP)
    kept = out_np != 0.0
    assert out.shape == x.shape and out.dtype == x.dtype
    assert np.allclose(out_np[kept], ref_scaled[kept], rtol=1e-5, atol=1e-5)
    n_dropped = int((~kept).sum())
    assert 0 < n_dropped < out_np.size

    print("KERNEL_OK")
</pallas_src>

<mosaic_0001>
module attributes {stable_mosaic.version = 11 : i64} {
  func.func @_pe_dropout_kernel(%arg0: i32, %arg1: i32, %arg2: memref<1xi32, #tpu.memory_space<smem>>, %arg3: memref<2x256xf32, #tpu.memory_space<vmem>>, %arg4: memref<1x256xf32, #tpu.memory_space<vmem>>, %arg5: memref<2x256xf32, #tpu.memory_space<vmem>>) attributes {dimension_semantics = [#tpu.dimension_semantics<parallel>, #tpu.dimension_semantics<parallel>], iteration_bounds = array<i64: 1, 1>, scalar_prefetch = 1 : i64, scratch_operands = 0 : i64, tpu.core_type = #tpu.core_type<tc>, window_params = [{transform_indices = @transform_0, window_bounds = array<i64: 2, 256>}, {transform_indices = @transform_1, window_bounds = array<i64: 1, 256>}, {transform_indices = @transform_2, window_bounds = array<i64: 2, 256>}]} {
    %c0 = arith.constant 0 : index
    %c0_0 = arith.constant 0 : index
    %0 = vector.load %arg3[%c0, %c0_0] : memref<2x256xf32, #tpu.memory_space<vmem>>, vector<2x256xf32>
    %c0_1 = arith.constant 0 : index
    %c0_2 = arith.constant 0 : index
    %1 = vector.load %arg4[%c0_1, %c0_2] : memref<1x256xf32, #tpu.memory_space<vmem>>, vector<1x256xf32>
    %2 = vector.broadcast %1 : vector<1x256xf32> to vector<2x256xf32>
    %3 = arith.addf %0, %2 : vector<2x256xf32>
    %c0_3 = arith.constant 0 : index
    %c0_4 = arith.constant 0 : index
    %4 = vector.load %arg5[%c0_3, %c0_4] : memref<2x256xf32, #tpu.memory_space<vmem>>, vector<2x256xf32>
    tpu.vector_store %arg5[%c0_3, %c0_4], %3 {strides = array<i32>} : memref<2x256xf32, #tpu.memory_space<vmem>>, vector<2x256xf32>,
    return
  }
  func.func @transform_0(%arg0: i32, %arg1: i32, %arg2: memref<1xi32, #tpu.memory_space<smem>>) -> (i32, i32) {
    %c0_i32 = arith.constant 0 : i32
    return %arg0, %arg1 : i32, i32
  }
  func.func @transform_1(%arg0: i32, %arg1: i32, %arg2: memref<1xi32, #tpu.memory_space<smem>>) -> (i32, i32) {
    %c0_i32 = arith.constant 0 : i32
    %c0_i32_0 = arith.constant 0 : i32
    return %c0_i32, %arg1 : i32, i32
  }
  func.func @transform_2(%arg0: i32, %arg1: i32, %arg2: memref<1xi32, #tpu.memory_space<smem>>) -> (i32, i32) {
    %c0_i32 = arith.constant 0 : i32
    return %arg0, %arg1 : i32, i32
  }
}

</mosaic_0001>

<llo_original>
// kernel: tpu_custom_call.1
$region0: #{tpu_custom_call.1}
  #allocation0 [shape = 'u32[]', space=smem, size = 0x4, offset = 0x4, fixed_abs, tag = 'smem constant byte address 0x4 - core index']
  #allocation1 [shape = 'u32[72,128]{1,0:T(1,128)}', space=vmem, size = 0x9000, scoped, tag = 'internal scratch']
  #allocation2 [shape = 's32[1]{0}', space=sflag, size = 0x4, scoped, tag = 'scoped memory for tpu_custom_call.1']
  #allocation3 [shape = 's32[1]{0:T(128)S(6)}', space=smem, size = 0x200, scoped, tag = 'prefetched SMEM operand 0']
  %s0 = inlined_call_operand.<no memory space> [shape: s32[1], index: 0, kind: input, shape index: {}]
  %s1 = inlined_call_operand.hbm [shape: f32[2,256], index: 1, kind: input, shape index: {}]
  %s2 = inlined_call_operand.vmem [shape: f32[1,256], index: 2, kind: input, shape index: {}]
  %s3 = inlined_call_operand.hbm [shape: f32[2,256], index: 3, kind: output, shape index: {}]
  %s4 = sld [smem:[#allocation0]]
  $region22: #{tpu_custom_call.1} parent=0
    _
  %s6 = ssub.s32 1, %s4
  %s7 = scalar_select 0, %s6, %s4
  %8 = sst [smem:[#allocation3]] %s0
  $region1: #{tpu_custom_call.1} parent=0
    #allocation4 [shape = 'u8[2048]{0}', space=vmem, size = 0x800, scoped, tag = 'input window, operand 1, single buffered']
    #allocation5 [shape = 's32[1]{0}', space=sflag, size = 0x4, scoped, tag = 'scoped memory for tpu_custom_call.1']
    #allocation6 [shape = 's32[1]{0}', space=sflag, size = 0x4, scoped, tag = 'scoped memory for tpu_custom_call.1']
    #allocation7 [shape = 'u8[2048]{0}', space=vmem, size = 0x800, scoped, tag = 'output window, operand 0, single buffered']
    %9 = vsyncpa [#allocation5], 0
    %10 = vsyncpa [#allocation6], 0
    // Predicated region
    $region2: #{tpu_custom_call.1} parent=1 // pred_check
      _
    $region3: #{tpu_custom_call.1} parent=1 // pred_check_branch
      %12 = sbr.rel (0) target = $region5
    $region4: #{tpu_custom_call.1} parent=1 // pred_region
      %14 = vsyncadd [#allocation5], 0
      %s16 = sshll.u32 %s1, 4
      %s17 = int_to_ptr.hbm [resolvable:$true] %s16
      %s18 = sshll.u32 [#allocation4], 4
      %s19 = int_to_ptr.vmem [resolvable:$true] %s18
      %21 = dma.hbm_to_vmem [thread:$0]  %s17, 64, %s19, [#allocation5]
    $region5: #{tpu_custom_call.1} parent=1 // pred_fallthru
      _
    // Predicated region
    $region6: #{tpu_custom_call.1} parent=1 // pred_check
      _
    $region7: #{tpu_custom_call.1} parent=1 // pred_check_branch
      %23 = sbr.rel (0) target = $region9
    $region8: #{tpu_custom_call.1} parent=1 // pred_region
      _
    $region9: #{tpu_custom_call.1} parent=1 // pred_fallthru
      _
    // Predicated region
    $region10: #{tpu_custom_call.1} parent=1 // pred_check
      _
    $region11: #{tpu_custom_call.1} parent=1 // pred_check_branch
      %25 = sbr.rel (0) target = $region13
    $region12: #{tpu_custom_call.1} parent=1 // pred_region
      %27 = dma.done [#allocation5], 64
    $region13: #{tpu_custom_call.1} parent=1 // pred_fallthru
      _
    %v28 = vld [vmem:[#allocation4] sm:$0xf]
    %v29 = vld [vmem:[%s2] sm:$0x3]
    %v31 = vperm.slane %v29, 0
    %v32 = vperm.slane %v29, 1
    %v33 = vrot.slane %v32, 6
    %vm34 = vcmask 1041408
    %v35 = vsel %vm34, %v31, %v33
    %v37 = vadd.f32 %v28, %v35
    %38 = vst [vmem:[#allocation7] sm:$0xf] %v37
    // Predicated region
    $region14: #{tpu_custom_call.1} parent=1 // pred_check
      _
    $region15: #{tpu_custom_call.1} parent=1 // pred_check_branch
      %40 = sbr.rel (0) target = $region17
    $region16: #{tpu_custom_call.1} parent=1 // pred_region
      %42 = vsyncadd [#allocation6], 0
      %s44 = sshll.u32 [#allocation7], 4
      %s45 = int_to_ptr.vmem [resolvable:$true] %s44
      %s46 = sshll.u32 %s3, 4
      %s47 = int_to_ptr.hbm [resolvable:$true] %s46
      %49 = dma.vmem_to_hbm [thread:$0]  %s45, 64, %s47, [#allocation6]
    $region17: #{tpu_custom_call.1} parent=1 // pred_fallthru
      _
    // Predicated region
    $region18: #{tpu_custom_call.1} parent=1 // pred_check
      _
    $region19: #{tpu_custom_call.1} parent=1 // pred_check_branch
      %51 = sbr.rel (0) target = $region21
    $region20: #{tpu_custom_call.1} parent=1 // pred_region
      %53 = dma.done [#allocation6], 64
    $region21: #{tpu_custom_call.1} parent=1 // pred_fallthru
      _
    %54 = vsyncpa [#allocation5], 1
    %55 = vsyncpa [#allocation6], 1

</llo_original>
